<compile_context>
chip_gen: v7x
topology: tpu7x:2x2x1
jax: 0.10.0
libtpu: 0.0.40
codegen_flags: <defaults>
</compile_context>

<pallas_src>
import functools

import jax
import jax.numpy as jnp
from jax import lax
from jax.experimental import pallas as pl
from jax.experimental.pallas import tpu as pltpu

_LANE = 128
_MIB = 1024 * 1024


def _chip_params():
    """Returns (block_bytes_per_input, vmem_limit_bytes or None, two_core_slices)."""
    try:
        kind = jax.devices()[0].device_kind.lower()
    except Exception:
        kind = ""
    if "v2" in kind or "v3" in kind:
        return 1 * _MIB, None, False
    if "v7" in kind or "tpu7" in kind:
        # 64 MiB physical VMEM/TC: 4 bufs x 5 MiB inputs + ~5 block-sized f32
        # temporaries stays under a 48 MiB scoped limit with headroom.
        return 5 * _MIB, 48 * _MIB, True
    if "v6" in kind:
        return 4 * _MIB, 64 * _MIB, False
    if "v5" in kind:
        return 3 * _MIB, 48 * _MIB, False
    return 4 * _MIB, 48 * _MIB, False


def _focal_loss_kernel(pred_ref, truth_ref, out_ref, *, alpha, gamma, eps,
                       rows, block_rows, blocks_per_slice, needs_mask):
    s = pl.program_id(0)   # slice axis ("parallel"; megacore on v7x)
    i = pl.program_id(1)   # reduction step within the slice ("arbitrary")

    @pl.when(i == 0)
    def _():
        out_ref[...] = jnp.zeros_like(out_ref)

    p = pred_ref[...].astype(jnp.float32)
    t = truth_ref[...].astype(jnp.float32)

    # Fused weight/alpha coefficient: alpha for t==1, 1-alpha for t==0, else 0.
    t_pos = t == 1.0
    coeff = jnp.where(
        t_pos, jnp.float32(alpha),
        jnp.where(t == 0.0, jnp.float32(1.0 - alpha), jnp.float32(0.0)))

    # Fused pos/neg branch: one log per element.
    q = jnp.where(t_pos, p, 1.0 - p)
    one_minus_q = 1.0 - q

    if float(gamma).is_integer() and 0 <= int(gamma) <= 4:
        gi = int(gamma)
        pow_term = None
        if gi >= 1:
            pow_term = one_minus_q
            for _ in range(gi - 1):
                pow_term = pow_term * one_minus_q    # VPU, no transcendental
    else:
        pow_term = jnp.power(one_minus_q, jnp.float32(gamma))

    fl = coeff * jnp.log(q + jnp.float32(eps))
    if pow_term is not None:
        fl = fl * pow_term

    def fold(x):
        # Pure-VPU fold of sublane groups onto the resident (1, 8, cols) block.
        return jnp.sum(x.reshape(-1, 8, x.shape[-1]), axis=0)[None]

    if not needs_mask:
        out_ref[...] += fold(fl)
    else:
        block_idx = s * blocks_per_slice + i
        row_start = block_idx * block_rows
        is_interior = row_start + block_rows <= rows

        @pl.when(is_interior)
        def _():
            out_ref[...] += fold(fl)

        @pl.when(jnp.logical_not(is_interior))
        def _():
            # Edge / clamped-overhang block: mask rows past the input end.
            row_ids = row_start + lax.broadcasted_iota(jnp.int32, fl.shape, 0)
            out_ref[...] += fold(jnp.where(row_ids < rows, fl, jnp.float32(0.0)))


def _pick_layout(n):
    """Returns (cols, bulk): bulk % (8 * cols) == 0, bulk <= n, tail = n - bulk."""
    for cols in (1024, 512, 256, 128):
        if n % (8 * cols) == 0:
            return cols, n
    cols = _LANE
    bulk = (n // (8 * cols)) * (8 * cols)
    return cols, bulk


def _focal_elems(p, t, alpha, gamma, eps):
    """Elementwise focal term (pre-negation), used for the tiny jnp tail."""
    p = p.astype(jnp.float32)
    t = t.astype(jnp.float32)
    pos = t == 1.0
    coeff = jnp.where(pos, jnp.float32(alpha),
                      jnp.where(t == 0.0, jnp.float32(1.0 - alpha), jnp.float32(0.0)))
    q = jnp.where(pos, p, 1.0 - p)
    return coeff * jnp.log(q + jnp.float32(eps)) * jnp.power(1.0 - q, jnp.float32(gamma))


def centnet_focal_loss(hm_preds, hm_truth, *, alpha=0.5, gamma=2.0, eps=1e-5):
    """-sum(focal_loss) over the whole heatmap (matches the torch module)."""
    assert hm_preds.shape == hm_truth.shape
    n = hm_preds.size
    p_flat = hm_preds.reshape(-1)
    t_flat = hm_truth.reshape(-1)

    cols, bulk = _pick_layout(n)

    # Tail (< 8*cols elems) handled with plain jnp: avoids a full-copy jnp.pad.
    tail_sum = jnp.float32(0.0)
    if bulk < n:
        tail_sum = jnp.sum(_focal_elems(p_flat[bulk:], t_flat[bulk:], alpha, gamma, eps))

    if bulk == 0:
        # TODO(synk): inputs smaller than 8*128 elements never reach the kernel.
        return -tail_sum

    rows = bulk // cols                         # multiple of 8 by construction
    p2d = p_flat[:bulk].reshape(rows, cols)
    t2d = t_flat[:bulk].reshape(rows, cols)

    itemsize = jnp.dtype(hm_preds.dtype).itemsize
    block_bytes, vmem_limit, two_core = _chip_params()

    # dtype-aware block sizing (multiple of 8 rows).
    block_rows_target = max(8, (block_bytes // (itemsize * cols)) // 8 * 8)
    block_rows = min(rows, block_rows_target)
    total_blocks = pl.cdiv(rows, block_rows)

    n_slices = 2 if (two_core and total_blocks >= 2) else 1
    blocks_per_slice = pl.cdiv(total_blocks, n_slices)
    last_block = total_blocks - 1
    needs_mask = (rows % block_rows != 0) or (n_slices * blocks_per_slice != total_blocks)

    def in_map(s, i):
        # Clamp overhang iterations onto the last block; the in-kernel row mask
        # (only emitted when needs_mask) zeroes their contribution.
        return (jnp.minimum(s * blocks_per_slice + i, last_block), 0)

    kernel = functools.partial(
        _focal_loss_kernel, alpha=float(alpha), gamma=float(gamma),
        eps=float(eps), rows=rows, block_rows=block_rows,
        blocks_per_slice=blocks_per_slice, needs_mask=needs_mask)

    int_gamma = float(gamma).is_integer() and 0 <= int(gamma) <= 4
    cost = pl.CostEstimate(
        flops=13 * bulk,
        transcendentals=bulk if int_gamma else 3 * bulk,
        bytes_accessed=2 * bulk * itemsize + n_slices * 8 * cols * 4)

    cp_kwargs = dict(dimension_semantics=("parallel", "arbitrary"))
    if vmem_limit is not None:
        cp_kwargs["vmem_limit_bytes"] = int(vmem_limit)

    partials = pl.pallas_call(
        kernel,
        out_shape=jax.ShapeDtypeStruct((n_slices, 8, cols), jnp.float32),
        grid_spec=pltpu.PrefetchScalarGridSpec(
            num_scalar_prefetch=0,
            grid=(n_slices, blocks_per_slice),
            in_specs=[
                pl.BlockSpec((block_rows, cols), in_map),
                pl.BlockSpec((block_rows, cols), in_map),
            ],
            out_specs=pl.BlockSpec((1, 8, cols), lambda s, i: (s, 0, 0)),
        ),
        compiler_params=pltpu.CompilerParams(**cp_kwargs),
        cost_estimate=cost,
    )(p2d, t2d)

    # Single tiny cross-lane reduce + negation outside the kernel.
    return -(jnp.sum(partials) + tail_sum)


def _reference(hm_preds, hm_truth, alpha=0.5, gamma=2.0, eps=1e-5):
    p = hm_preds.astype(jnp.float32)
    t = hm_truth.astype(jnp.float32)
    pos_w = (t == 1.0).astype(jnp.float32)
    neg_w = (t == 0.0).astype(jnp.float32)
    a = jnp.where(t == 1.0, alpha, 1.0 - alpha)
    pos_loss = jnp.log(p + eps) * jnp.power(1.0 - p, gamma) * pos_w
    neg_loss = jnp.log(1.0 - p + eps) * jnp.power(p, gamma) * neg_w
    return -jnp.sum(a * (pos_loss + neg_loss))


if __name__ == "__main__":
    key = jax.random.PRNGKey(0)
    k1, k2 = jax.random.split(key)

    B, C, H, W = 2, 4, 16, 16  # NCHW heatmaps

    # Predictions: sigmoid-like heatmap values in (0, 1).
    hm_preds = jax.nn.sigmoid(jax.random.normal(k1, (B, C, H, W), jnp.float32))

    # Truth: mostly zeros with a few exact ones (CenterNet-style peaks).
    hm_truth = (jax.random.uniform(k2, (B, C, H, W)) > 0.95).astype(jnp.float32)

    loss = centnet_focal_loss(hm_preds, hm_truth, alpha=0.5, gamma=2.0)
    loss = jax.block_until_ready(loss)

    ref = _reference(hm_preds, hm_truth)
    assert jnp.allclose(loss, ref, rtol=1e-5, atol=1e-4), (loss, ref)

    print("KERNEL_OK")
</pallas_src>

<mosaic_0001>
module attributes {stable_mosaic.version = 11 : i64} {
  func.func @_focal_loss_kernel(%arg0: i32, %arg1: i32, %arg2: memref<8x256xf32, #tpu.memory_space<vmem>>, %arg3: memref<8x256xf32, #tpu.memory_space<vmem>>, %arg4: memref<1x8x256xf32, #tpu.memory_space<vmem>>) attributes {dimension_semantics = [#tpu.dimension_semantics<parallel>, #tpu.dimension_semantics<arbitrary>], iteration_bounds = array<i64: 1, 1>, scalar_prefetch = 0 : i64, scratch_operands = 0 : i64, tpu.core_type = #tpu.core_type<tc>, window_params = [{transform_indices = @transform_0, window_bounds = array<i64: 8, 256>}, {transform_indices = @transform_1, window_bounds = array<i64: 8, 256>}, {transform_indices = @transform_2, window_bounds = array<i64: 1, 8, 256>}]} {
    %c0_i32 = arith.constant 0 : i32
    %0 = arith.cmpi eq, %arg1, %c0_i32 : i32
    %1 = arith.extui %0 : i1 to i32
    %c0_i32_0 = arith.constant 0 : i32
    %2 = arith.cmpi ne, %1, %c0_i32_0 : i32
    scf.if %2 {
      %cst_18 = arith.constant 0.000000e+00 : f32
      %31 = vector.broadcast %cst_18 : f32 to vector<1x8x256xf32>
      %c0_19 = arith.constant 0 : index
      %c0_20 = arith.constant 0 : index
      %c0_21 = arith.constant 0 : index
      %32 = vector.load %arg4[%c0_19, %c0_20, %c0_21] : memref<1x8x256xf32, #tpu.memory_space<vmem>>, vector<1x8x256xf32>
      tpu.vector_store %arg4[%c0_19, %c0_20, %c0_21], %31 {strides = array<i32>} : memref<1x8x256xf32, #tpu.memory_space<vmem>>, vector<1x8x256xf32>,
    } else {
    }
    %c0 = arith.constant 0 : index
    %c0_1 = arith.constant 0 : index
    %3 = vector.load %arg2[%c0, %c0_1] : memref<8x256xf32, #tpu.memory_space<vmem>>, vector<8x256xf32>
    %c0_2 = arith.constant 0 : index
    %c0_3 = arith.constant 0 : index
    %4 = vector.load %arg3[%c0_2, %c0_3] : memref<8x256xf32, #tpu.memory_space<vmem>>, vector<8x256xf32>
    %cst = arith.constant 1.000000e+00 : f32
    %5 = vector.broadcast %cst : f32 to vector<8x256xf32>
    %6 = arith.cmpf oeq, %4, %5 : vector<8x256xf32>
    %cst_4 = arith.constant 0.000000e+00 : f32
    %7 = vector.broadcast %cst_4 : f32 to vector<8x256xf32>
    %8 = arith.cmpf oeq, %4, %7 : vector<8x256xf32>
    %cst_5 = arith.constant 5.000000e-01 : f32
    %cst_6 = arith.constant 0.000000e+00 : f32
    %9 = vector.broadcast %cst_5 : f32 to vector<8x256xf32>
    %10 = vector.broadcast %cst_6 : f32 to vector<8x256xf32>
    %11 = arith.select %8, %9, %10 : vector<8x256xi1>, vector<8x256xf32>
    %cst_7 = arith.constant 5.000000e-01 : f32
    %12 = vector.broadcast %cst_7 : f32 to vector<8x256xf32>
    %13 = arith.select %6, %12, %11 : vector<8x256xi1>, vector<8x256xf32>
    %cst_8 = arith.constant 1.000000e+00 : f32
    %14 = vector.broadcast %cst_8 : f32 to vector<8x256xf32>
    %15 = arith.subf %14, %3 : vector<8x256xf32>
    %16 = arith.select %6, %3, %15 : vector<8x256xi1>, vector<8x256xf32>
    %cst_9 = arith.constant 1.000000e+00 : f32
    %17 = vector.broadcast %cst_9 : f32 to vector<8x256xf32>
    %18 = arith.subf %17, %16 : vector<8x256xf32>
    %19 = arith.mulf %18, %18 : vector<8x256xf32>
    %cst_10 = arith.constant 9.99999974E-6 : f32
    %20 = vector.broadcast %cst_10 : f32 to vector<8x256xf32>
    %21 = arith.addf %16, %20 : vector<8x256xf32>
    %22 = math.log %21 : vector<8x256xf32>
    %23 = arith.mulf %13, %22 : vector<8x256xf32>
    %24 = arith.mulf %23, %19 : vector<8x256xf32>
    %c0_11 = arith.constant 0 : index
    %c0_12 = arith.constant 0 : index
    %c0_13 = arith.constant 0 : index
    %25 = vector.load %arg4[%c0_11, %c0_12, %c0_13] : memref<1x8x256xf32, #tpu.memory_space<vmem>>, vector<1x8x256xf32>
    %26 = vector.shape_cast %24 : vector<8x256xf32> to vector<1x8x256xf32>
    %cst_14 = arith.constant dense<0.000000e+00> : vector<8x256xf32>
    %27 = vector.multi_reduction <add>, %26, %cst_14 [0] : vector<1x8x256xf32> to vector<8x256xf32>
    %28 = vector.shape_cast %27 : vector<8x256xf32> to vector<1x8x256xf32>
    %29 = arith.addf %25, %28 : vector<1x8x256xf32>
    %c0_15 = arith.constant 0 : index
    %c0_16 = arith.constant 0 : index
    %c0_17 = arith.constant 0 : index
    %30 = vector.load %arg4[%c0_15, %c0_16, %c0_17] : memref<1x8x256xf32, #tpu.memory_space<vmem>>, vector<1x8x256xf32>
    tpu.vector_store %arg4[%c0_15, %c0_16, %c0_17], %29 {strides = array<i32>} : memref<1x8x256xf32, #tpu.memory_space<vmem>>, vector<1x8x256xf32>,
    return
  }
  func.func @transform_0(%arg0: i32, %arg1: i32) -> (i32, i32) {
    %c1_i32 = arith.constant 1 : i32
    %0 = arith.muli %arg0, %c1_i32 : i32
    %1 = arith.addi %0, %arg1 : i32
    %c0_i32 = arith.constant 0 : i32
    %2 = arith.minsi %1, %c0_i32 : i32
    %c0_i32_0 = arith.constant 0 : i32
    %c0_i32_1 = arith.constant 0 : i32
    return %2, %c0_i32_0 : i32, i32
  }
  func.func @transform_1(%arg0: i32, %arg1: i32) -> (i32, i32) {
    %c1_i32 = arith.constant 1 : i32
    %0 = arith.muli %arg0, %c1_i32 : i32
    %1 = arith.addi %0, %arg1 : i32
    %c0_i32 = arith.constant 0 : i32
    %2 = arith.minsi %1, %c0_i32 : i32
    %c0_i32_0 = arith.constant 0 : i32
    %c0_i32_1 = arith.constant 0 : i32
    return %2, %c0_i32_0 : i32, i32
  }
  func.func @transform_2(%arg0: i32, %arg1: i32) -> (i32, i32, i32) {
    %c0_i32 = arith.constant 0 : i32
    %c0_i32_0 = arith.constant 0 : i32
    %c0_i32_1 = arith.constant 0 : i32
    return %arg0, %c0_i32, %c0_i32_0 : i32, i32, i32
  }
}

</mosaic_0001>

<llo_original>
// kernel: tpu_custom_call.1
$region0: #{tpu_custom_call.1}
  #allocation0 [shape = 'u32[]', space=smem, size = 0x4, offset = 0x4, fixed_abs, tag = 'smem constant byte address 0x4 - core index']
  #allocation1 [shape = 'u32[144,128]{1,0:T(1,128)}', space=vmem, size = 0x12000, scoped, tag = 'internal scratch']
  %s0 = inlined_call_operand.hbm [shape: f32[8,256], index: 0, kind: input, shape index: {}]
  %s1 = inlined_call_operand.hbm [shape: f32[8,256], index: 1, kind: input, shape index: {}]
  %s2 = inlined_call_operand.hbm [shape: f32[1,8,256], index: 2, kind: output, shape index: {}]
  %s3 = sld [smem:[#allocation0]]
  $region30: #{tpu_custom_call.1} parent=0
    _
  %s5 = ssub.s32 1, %s3
  %s6 = scalar_select 0, %s5, %s3
  $region1: #{tpu_custom_call.1} parent=0
    #allocation2 [shape = 'u8[8192]{0}', space=vmem, size = 0x2000, scoped, tag = 'input window, operand 0, single buffered']
    #allocation3 [shape = 's32[1]{0}', space=sflag, size = 0x4, scoped, tag = 'scoped memory for tpu_custom_call.1']
    #allocation4 [shape = 's32[1]{0}', space=sflag, size = 0x4, scoped, tag = 'scoped memory for tpu_custom_call.1']
    #allocation5 [shape = 'u8[8192]{0}', space=vmem, size = 0x2000, scoped, tag = 'input window, operand 1, single buffered']
    #allocation6 [shape = 's32[1]{0}', space=sflag, size = 0x4, scoped, tag = 'scoped memory for tpu_custom_call.1']
    #allocation7 [shape = 'u8[8192]{0}', space=vmem, size = 0x2000, scoped, tag = 'output window, operand 0, single buffered']
    %7 = vsyncpa [#allocation3], 0
    %8 = vsyncpa [#allocation6], 0
    %9 = vsyncpa [#allocation4], 0
    // Predicated region
    $region2: #{tpu_custom_call.1} parent=1 // pred_check
      _
    $region3: #{tpu_custom_call.1} parent=1 // pred_check_branch
      %11 = sbr.rel (0) target = $region5
    $region4: #{tpu_custom_call.1} parent=1 // pred_region
      %s12 = sadd.s32 0, 0
      %p13 = scmp.lt.s32.totalorder %s12, 0
      %s14 = scalar_select %p13, %s12, 0
      %s16 = ssub.s32 256, 256
      %17 = vsyncadd [#allocation3], %s16
      %s18 = smul.addr %s14, 2
      %s19 = smul.addr %s18, 128
      %s20 = scalar_lea.hbm %s0, %s19
      %s22 = sshll.u32 [#allocation2], 4
      %s23 = int_to_ptr.vmem [resolvable:$true] %s22
      %25 = dma.hbm_to_vmem [thread:$0]  %s20, 256, %s23, [#allocation3]
    $region5: #{tpu_custom_call.1} parent=1 // pred_fallthru
      _
    // Predicated region
    $region6: #{tpu_custom_call.1} parent=1 // pred_check
      _
    $region7: #{tpu_custom_call.1} parent=1 // pred_check_branch
      %27 = sbr.rel (0) target = $region9
    $region8: #{tpu_custom_call.1} parent=1 // pred_region
      %s28 = sadd.s32 0, 0
      %p29 = scmp.lt.s32.totalorder %s28, 0
      %s30 = scalar_select %p29, %s28, 0
      %s32 = ssub.s32 256, 256
      %33 = vsyncadd [#allocation6], %s32
      %s34 = smul.addr %s30, 2
      %s35 = smul.addr %s34, 128
      %s36 = scalar_lea.hbm %s1, %s35
      %s38 = sshll.u32 [#allocation5], 4
      %s39 = int_to_ptr.vmem [resolvable:$true] %s38
      %41 = dma.hbm_to_vmem [thread:$0]  %s36, 256, %s39, [#allocation6]
    $region9: #{tpu_custom_call.1} parent=1 // pred_fallthru
      _
    // Predicated region
    $region10: #{tpu_custom_call.1} parent=1 // pred_check
      _
    $region11: #{tpu_custom_call.1} parent=1 // pred_check_branch
      %43 = sbr.rel (0) target = $region13
    $region12: #{tpu_custom_call.1} parent=1 // pred_region
      %44 = dma.done [#allocation3], 256
    $region13: #{tpu_custom_call.1} parent=1 // pred_fallthru
      _
    // Predicated region
    $region14: #{tpu_custom_call.1} parent=1 // pred_check
      _
    $region15: #{tpu_custom_call.1} parent=1 // pred_check_branch
      %46 = sbr.rel (0) target = $region17
    $region16: #{tpu_custom_call.1} parent=1 // pred_region
      %47 = dma.done [#allocation6], 256
    $region17: #{tpu_custom_call.1} parent=1 // pred_fallthru
      _
    %s48 = sadd.s32 0, 0
    %p49 = scmp.lt.s32.totalorder %s48, 0
    %s50 = scalar_select %p49, %s48, 0
    %s51 = sadd.s32 0, 0
    %p52 = scmp.lt.s32.totalorder %s51, 0
    %s53 = scalar_select %p52, %s51, 0
    %p54 = scmp.eq.s32.totalorder 0, 0
    // Predicated region
    $region18: #{tpu_custom_call.1} parent=1 // pred_check
      %p55 = pneg %p54
    $region19: #{tpu_custom_call.1} parent=1 // pred_check_branch
      %57 = sbr.rel (%p55) target = $region21
    $region20: #{tpu_custom_call.1} parent=1 // pred_region
      %58 = vst [vmem:[#allocation7] sm:$0xff] 0.0
      %59 = vst [vmem:[#allocation7 + $0x8] sm:$0xff] 0.0
    $region21: #{tpu_custom_call.1} parent=1 // pred_fallthru
      _
    %v60 = vld [vmem:[#allocation2] sm:$0xff]
    %v61 = vld [vmem:[#allocation2 + $0x8] sm:$0xff]
    %v62 = vld [vmem:[#allocation5] sm:$0xff]
    %v63 = vld [vmem:[#allocation5 + $0x8] sm:$0xff]
    %vm64 = vcmp.eq.f32.partialorder %v62, 1.0
    %vm65 = vcmp.eq.f32.partialorder %v63, 1.0
    %vm66 = vcmp.eq.f32.partialorder %v62, 0.0
    %vm67 = vcmp.eq.f32.partialorder %v63, 0.0
    %v68 = vsel %vm66, 0.5, 0.0
    %v69 = vsel %vm67, 0.5, 0.0
    %v70 = vsel %vm64, 0.5, %v68
    %v71 = vsel %vm65, 0.5, %v69
    %v72 = vsub.f32 1.0, %v60
    %v73 = vsub.f32 1.0, %v61
    %v74 = vsel %vm64, %v60, %v72
    %v75 = vsel %vm65, %v61, %v73
    %v76 = vsub.f32 1.0, %v74
    %v77 = vsub.f32 1.0, %v75
    %v78 = vmul.f32 %v76, %v76
    %v79 = vmul.f32 %v77, %v77
    %v80 = vadd.f32 %v74, 1e-05
    %v81 = vadd.f32 %v75, 1e-05
    %v82 = vlog2.pop %v80
    %v83 = vmul.f32 %v82, 0.6931472
    %v84 = vlog2.pop %v81
    %v85 = vmul.f32 %v84, 0.6931472
    %v86 = vmul.f32 %v70, %v83
    %v87 = vmul.f32 %v71, %v85
    %v88 = vmul.f32 %v86, %v78
    %v89 = vmul.f32 %v87, %v79
    %v90 = vld [vmem:[#allocation7] sm:$0xff]
    %v91 = vld [vmem:[#allocation7 + $0x8] sm:$0xff]
    %v92 = vadd.f32 %v88, 0.0
    %v93 = vadd.f32 %v89, 0.0
    %v94 = vadd.f32 %v90, %v92
    %v95 = vadd.f32 %v91, %v93
    %96 = vst [vmem:[#allocation7] sm:$0xff] %v94
    %97 = vst [vmem:[#allocation7 + $0x8] sm:$0xff] %v95
    // Predicated region
    $region22: #{tpu_custom_call.1} parent=1 // pred_check
      _
    $region23: #{tpu_custom_call.1} parent=1 // pred_check_branch
      %99 = sbr.rel (0) target = $region25
    $region24: #{tpu_custom_call.1} parent=1 // pred_region
      %s101 = ssub.s32 256, 256
      %102 = vsyncadd [#allocation4], %s101
      %s104 = sshll.u32 [#allocation7], 4
      %s105 = int_to_ptr.vmem [resolvable:$true] %s104
      %107 = dma.vmem_to_hbm [thread:$0]  %s105, 256, %s2, [#allocation4]
    $region25: #{tpu_custom_call.1} parent=1 // pred_fallthru
      _
    // Predicated region
    $region26: #{tpu_custom_call.1} parent=1 // pred_check
      _
    $region27: #{tpu_custom_call.1} parent=1 // pred_check_branch
      %109 = sbr.rel (0) target = $region29
    $region28: #{tpu_custom_call.1} parent=1 // pred_region
      %110 = dma.done [#allocation4], 256
    $region29: #{tpu_custom_call.1} parent=1 // pred_fallthru
      _
    %111 = vsyncpa [#allocation3], 1
    %112 = vsyncpa [#allocation6], 1
    %113 = vsyncpa [#allocation4], 1

</llo_original>
